<compile_context>
chip_gen: v7x
topology: tpu7x:2x2x1
jax: 0.10.0
libtpu: 0.0.40
codegen_flags: <defaults>
</compile_context>

<pallas_src>
import jax
import jax.numpy as jnp
from jax.experimental import pallas as pl
from jax.experimental.pallas import tpu as pltpu


def _round_up(x, m):
    return ((x + m - 1) // m) * m


def _linear_kernel(idx_ref, emb_ref, dense_ref, w_ref, out_ref):
    idx = idx_ref[...]        # [F, TB]       int32 (batch on lanes)
    emb = emb_ref[...]        # [F_pad, V_pad] f32  (rows F.. are zero)
    dense_t = dense_ref[...]  # [D_pad, TB]   f32   (batch on lanes)
    w_col = w_ref[...]        # [D_pad, 1]    f32   (rows D.. are zero)

    F, TB = idx.shape
    V = emb.shape[1]

    # Sparse logit: VPU select-accumulate over the padded vocab (no one-hot
    # materialization, no MXU).  V is small and static, so this unrolls.
    acc = jnp.zeros((F, TB), jnp.float32)
    for v in range(V):
        acc = acc + jnp.where(idx == v, emb[:F, v:v + 1], 0.0)
    sparse_logit = jnp.sum(acc, axis=0, keepdims=True)                 # [1, TB]

    # Dense logit: elementwise multiply by the weight column + sublane reduce.
    dense_logit = jnp.sum(dense_t * w_col, axis=0, keepdims=True)      # [1, TB]

    out_ref[...] = (sparse_logit + dense_logit).reshape(1, 1, TB)      # lane-dense


def _choose_tile_b(B):
    # Largest lane-aligned tile that still yields >= 2 grid steps, so the
    # "parallel" grid axis can shard across v7x's two TensorCores.
    for t in (4096, 2048, 1024, 512, 256, 128):
        if B >= 2 * t:
            return t
    return 128


def prepare_linear_params(sparse_feats, dense_feats, emb_tables, dense_weight):
    """One-time parameter packing (hoisted out of the per-call hot path).

    Returns:
      emb_pad: [F_pad, V_pad] f32 -- emb_pad[f, v] = linear-embedding value of
               feature f at id v; vocab padded to a multiple of 8 (not 128),
               features padded to a multiple of 8 sublanes with zeros.
      w_col:   [D_pad, 1] f32 -- dense weight as a column, zero padded.
    """
    F = len(sparse_feats)
    F_pad = _round_up(max(F, 1), 8)
    max_vocab = max(v for _, v in sparse_feats)
    V_pad = _round_up(max(max_vocab, 1), 8)

    emb_pad = jnp.zeros((F_pad, V_pad), jnp.float32)
    for f, (name, vocab) in enumerate(sparse_feats):
        emb_pad = emb_pad.at[f, :vocab].set(
            emb_tables[name][:, 0].astype(jnp.float32))

    D = sum(dim for _, dim in dense_feats)
    D_pad = _round_up(max(D, 1), 8)
    w_col = jnp.zeros((D_pad, 1), jnp.float32)
    w_col = w_col.at[:D, 0].set(dense_weight.astype(jnp.float32).reshape(D))
    return emb_pad, w_col


def make_linear_forward(feature_index, sparse_feats, dense_feats, tile_b=None):
    """Build a jitted forward(X, emb_pad, w_col) -> [B, 1] f32."""
    sparse_cols = tuple(feature_index[n][0] for n, _ in sparse_feats)
    dense_ranges = tuple(feature_index[n] for n, _ in dense_feats)
    F = len(sparse_feats)
    D = sum(dim for _, dim in dense_feats)
    D_pad = _round_up(max(D, 1), 8)

    @jax.jit
    def forward(X, emb_pad, w_col):
        B = X.shape[0]
        F_pad, V_pad = emb_pad.shape

        # Glue (mirrors the torch slicing); fused by XLA under this jit.
        idx_t = jnp.stack([X[:, c] for c in sparse_cols], axis=0)
        idx_t = idx_t.astype(jnp.int32)                                 # [F, B]
        dense_t = jnp.concatenate(
            [X[:, s:e] for (s, e) in dense_ranges], axis=1)
        dense_t = dense_t.astype(jnp.float32).T                         # [D, B]

        tb = tile_b if tile_b is not None else _choose_tile_b(B)
        num_tiles = pl.cdiv(B, tb)
        B_pad = num_tiles * tb

        # Batch on lanes; pad batch to a tile multiple (padded rows do id-0
        # lookups + zero dense math and are sliced off below).
        idx_t = jnp.pad(idx_t, ((0, 0), (0, B_pad - B)))                # [F, B_pad]
        dense_t = jnp.pad(dense_t, ((0, D_pad - D), (0, B_pad - B)))    # [D_pad, B_pad]

        # Actual VMEM footprint: double-buffered idx/dense/out tiles plus the
        # tiny resident emb/w; floor at the default scoped limit, cap at 32 MiB
        # so we never over-reserve on v7x (64 MiB physical).
        tile_bytes = 4 * tb * (F + D_pad + 1)
        resident_bytes = 4 * (F_pad * V_pad + D_pad)
        vmem_limit = int(min(32 * 2**20,
                             max(16 * 2**20, 4 * tile_bytes + resident_bytes + 2**20)))

        out = pl.pallas_call(
            _linear_kernel,
            grid=(num_tiles,),
            in_specs=[
                pl.BlockSpec((F, tb), lambda i: (0, i)),          # ids, per-tile
                pl.BlockSpec((F_pad, V_pad), lambda i: (0, 0)),   # emb, resident
                pl.BlockSpec((D_pad, tb), lambda i: (0, i)),      # dense, per-tile
                pl.BlockSpec((D_pad, 1), lambda i: (0, 0)),       # weight, resident
            ],
            out_specs=pl.BlockSpec((1, 1, tb), lambda i: (i, 0, 0)),
            out_shape=jax.ShapeDtypeStruct((num_tiles, 1, tb), jnp.float32),
            compiler_params=pltpu.CompilerParams(
                dimension_semantics=("parallel",),
                vmem_limit_bytes=vmem_limit,
            ),
        )(idx_t, emb_pad, dense_t, w_col)

        return out.reshape(B_pad, 1)[:B]                                # [B, 1]

    return forward


if __name__ == "__main__":
    key = jax.random.PRNGKey(0)
    init_std = 1e-4
    B = 260  # exercises multi-tile grid (tile 128 -> 3 tiles) + batch padding

    # Feature columns: 3 sparse (vocab 7, 11, 5; linear embedding dim 1),
    # 2 dense (dims 4 and 2).
    sparse_feats = [("s0", 7), ("s1", 11), ("s2", 5)]
    dense_feats = [("d0", 4), ("d1", 2)]

    # feature_index (name -> (start, end) column range in X), like build_input_features.
    feature_index = {}
    start = 0
    for name, _ in sparse_feats:
        feature_index[name] = (start, start + 1)
        start += 1
    for name, dim in dense_feats:
        feature_index[name] = (start, start + dim)
        start += dim
    total_cols = start  # 3 + 6 = 9

    keys = jax.random.split(key, 8)
    emb_tables = {
        "s0": init_std * jax.random.normal(keys[0], (7, 1), jnp.float32),
        "s1": init_std * jax.random.normal(keys[1], (11, 1), jnp.float32),
        "s2": init_std * jax.random.normal(keys[2], (5, 1), jnp.float32),
    }
    dense_weight = init_std * jax.random.normal(keys[3], (6, 1), jnp.float32)

    # Build input X [B, 9]: sparse id columns (as floats) then dense values.
    s0 = jax.random.randint(keys[4], (B, 1), 0, 7).astype(jnp.float32)
    s1 = jax.random.randint(keys[5], (B, 1), 0, 11).astype(jnp.float32)
    s2 = jax.random.randint(keys[6], (B, 1), 0, 5).astype(jnp.float32)
    dvals = jax.random.normal(keys[7], (B, 6), jnp.float32)
    X = jnp.concatenate([s0, s1, s2, dvals], axis=1)
    assert X.shape == (B, total_cols)

    # One-time parameter packing (hoisted out of the forward hot path).
    emb_pad, w_col = prepare_linear_params(sparse_feats, dense_feats,
                                           emb_tables, dense_weight)

    linear_forward = make_linear_forward(feature_index, sparse_feats, dense_feats)
    out = linear_forward(X, emb_pad, w_col)
    out = jax.block_until_ready(out)

    # Pure-JAX reference (mirrors the PyTorch forward exactly).
    idx_ref = X[:, :3].astype(jnp.int32)
    sparse_emb = jnp.concatenate(
        [emb_tables[name][idx_ref[:, f], :] for f, (name, _) in enumerate(sparse_feats)],
        axis=-1,
    )  # [B, 3]
    ref = jnp.sum(sparse_emb, axis=-1, keepdims=True) + X[:, 3:9] @ dense_weight

    assert out.shape == (B, 1) and out.dtype == jnp.float32
    assert jnp.allclose(out, ref, atol=1e-5, rtol=1e-5)
    print("KERNEL_OK")
</pallas_src>

<mosaic_0001>
module attributes {stable_mosaic.version = 11 : i64} {
  func.func @_linear_kernel(%arg0: i32, %arg1: memref<3x128xi32, #tpu.memory_space<vmem>>, %arg2: memref<8x16xf32, #tpu.memory_space<vmem>>, %arg3: memref<8x128xf32, #tpu.memory_space<vmem>>, %arg4: memref<8x1xf32, #tpu.memory_space<vmem>>, %arg5: memref<1x1x128xf32, #tpu.memory_space<vmem>>) attributes {dimension_semantics = [#tpu.dimension_semantics<parallel>], iteration_bounds = array<i64: 3>, scalar_prefetch = 0 : i64, scratch_operands = 0 : i64, tpu.core_type = #tpu.core_type<tc>, window_params = [{transform_indices = @transform_0, window_bounds = array<i64: 3, 128>}, {pipeline_mode = #tpu.pipeline_mode<synchronous>, transform_indices = @transform_1, window_bounds = array<i64: 8, 16>}, {transform_indices = @transform_2, window_bounds = array<i64: 8, 128>}, {pipeline_mode = #tpu.pipeline_mode<synchronous>, transform_indices = @transform_3, window_bounds = array<i64: 8, 1>}, {transform_indices = @transform_4, window_bounds = array<i64: 1, 1, 128>}]} {
    %c0 = arith.constant 0 : index
    %c0_0 = arith.constant 0 : index
    %0 = vector.load %arg1[%c0, %c0_0] : memref<3x128xi32, #tpu.memory_space<vmem>>, vector<3x128xi32>
    %c0_1 = arith.constant 0 : index
    %c0_2 = arith.constant 0 : index
    %1 = vector.load %arg2[%c0_1, %c0_2] : memref<8x16xf32, #tpu.memory_space<vmem>>, vector<8x16xf32>
    %c0_3 = arith.constant 0 : index
    %c0_4 = arith.constant 0 : index
    %2 = vector.load %arg3[%c0_3, %c0_4] : memref<8x128xf32, #tpu.memory_space<vmem>>, vector<8x128xf32>
    %c0_5 = arith.constant 0 : index
    %c0_6 = arith.constant 0 : index
    %3 = vector.load %arg4[%c0_5, %c0_6] : memref<8x1xf32, #tpu.memory_space<vmem>>, vector<8x1xf32>
    %cst = arith.constant 0.000000e+00 : f32
    %4 = vector.broadcast %cst : f32 to vector<3x128xf32>
    %c0_i32 = arith.constant 0 : i32
    %5 = vector.broadcast %c0_i32 : i32 to vector<3x128xi32>
    %6 = arith.cmpi eq, %0, %5 : vector<3x128xi32>
    %7 = vector.extract_strided_slice %1 {offsets = [0, 0], sizes = [3, 1], strides = [1, 1]} : vector<8x16xf32> to vector<3x1xf32>
    %cst_7 = arith.constant 0.000000e+00 : f32
    %8 = vector.shape_cast %7 : vector<3x1xf32> to vector<3x1xf32>
    %9 = vector.broadcast %8 : vector<3x1xf32> to vector<3x128xf32>
    %10 = vector.broadcast %cst_7 : f32 to vector<3x128xf32>
    %11 = arith.select %6, %9, %10 : vector<3x128xi1>, vector<3x128xf32>
    %12 = arith.addf %4, %11 : vector<3x128xf32>
    %c1_i32 = arith.constant 1 : i32
    %13 = vector.broadcast %c1_i32 : i32 to vector<3x128xi32>
    %14 = arith.cmpi eq, %0, %13 : vector<3x128xi32>
    %15 = vector.extract_strided_slice %1 {offsets = [0, 1], sizes = [3, 1], strides = [1, 1]} : vector<8x16xf32> to vector<3x1xf32>
    %cst_8 = arith.constant 0.000000e+00 : f32
    %16 = vector.shape_cast %15 : vector<3x1xf32> to vector<3x1xf32>
    %17 = vector.broadcast %16 : vector<3x1xf32> to vector<3x128xf32>
    %18 = vector.broadcast %cst_8 : f32 to vector<3x128xf32>
    %19 = arith.select %14, %17, %18 : vector<3x128xi1>, vector<3x128xf32>
    %20 = arith.addf %12, %19 : vector<3x128xf32>
    %c2_i32 = arith.constant 2 : i32
    %21 = vector.broadcast %c2_i32 : i32 to vector<3x128xi32>
    %22 = arith.cmpi eq, %0, %21 : vector<3x128xi32>
    %23 = vector.extract_strided_slice %1 {offsets = [0, 2], sizes = [3, 1], strides = [1, 1]} : vector<8x16xf32> to vector<3x1xf32>
    %cst_9 = arith.constant 0.000000e+00 : f32
    %24 = vector.shape_cast %23 : vector<3x1xf32> to vector<3x1xf32>
    %25 = vector.broadcast %24 : vector<3x1xf32> to vector<3x128xf32>
    %26 = vector.broadcast %cst_9 : f32 to vector<3x128xf32>
    %27 = arith.select %22, %25, %26 : vector<3x128xi1>, vector<3x128xf32>
    %28 = arith.addf %20, %27 : vector<3x128xf32>
    %c3_i32 = arith.constant 3 : i32
    %29 = vector.broadcast %c3_i32 : i32 to vector<3x128xi32>
    %30 = arith.cmpi eq, %0, %29 : vector<3x128xi32>
    %31 = vector.extract_strided_slice %1 {offsets = [0, 3], sizes = [3, 1], strides = [1, 1]} : vector<8x16xf32> to vector<3x1xf32>
    %cst_10 = arith.constant 0.000000e+00 : f32
    %32 = vector.shape_cast %31 : vector<3x1xf32> to vector<3x1xf32>
    %33 = vector.broadcast %32 : vector<3x1xf32> to vector<3x128xf32>
    %34 = vector.broadcast %cst_10 : f32 to vector<3x128xf32>
    %35 = arith.select %30, %33, %34 : vector<3x128xi1>, vector<3x128xf32>
    %36 = arith.addf %28, %35 : vector<3x128xf32>
    %c4_i32 = arith.constant 4 : i32
    %37 = vector.broadcast %c4_i32 : i32 to vector<3x128xi32>
    %38 = arith.cmpi eq, %0, %37 : vector<3x128xi32>
    %39 = vector.extract_strided_slice %1 {offsets = [0, 4], sizes = [3, 1], strides = [1, 1]} : vector<8x16xf32> to vector<3x1xf32>
    %cst_11 = arith.constant 0.000000e+00 : f32
    %40 = vector.shape_cast %39 : vector<3x1xf32> to vector<3x1xf32>
    %41 = vector.broadcast %40 : vector<3x1xf32> to vector<3x128xf32>
    %42 = vector.broadcast %cst_11 : f32 to vector<3x128xf32>
    %43 = arith.select %38, %41, %42 : vector<3x128xi1>, vector<3x128xf32>
    %44 = arith.addf %36, %43 : vector<3x128xf32>
    %c5_i32 = arith.constant 5 : i32
    %45 = vector.broadcast %c5_i32 : i32 to vector<3x128xi32>
    %46 = arith.cmpi eq, %0, %45 : vector<3x128xi32>
    %47 = vector.extract_strided_slice %1 {offsets = [0, 5], sizes = [3, 1], strides = [1, 1]} : vector<8x16xf32> to vector<3x1xf32>
    %cst_12 = arith.constant 0.000000e+00 : f32
    %48 = vector.shape_cast %47 : vector<3x1xf32> to vector<3x1xf32>
    %49 = vector.broadcast %48 : vector<3x1xf32> to vector<3x128xf32>
    %50 = vector.broadcast %cst_12 : f32 to vector<3x128xf32>
    %51 = arith.select %46, %49, %50 : vector<3x128xi1>, vector<3x128xf32>
    %52 = arith.addf %44, %51 : vector<3x128xf32>
    %c6_i32 = arith.constant 6 : i32
    %53 = vector.broadcast %c6_i32 : i32 to vector<3x128xi32>
    %54 = arith.cmpi eq, %0, %53 : vector<3x128xi32>
    %55 = vector.extract_strided_slice %1 {offsets = [0, 6], sizes = [3, 1], strides = [1, 1]} : vector<8x16xf32> to vector<3x1xf32>
    %cst_13 = arith.constant 0.000000e+00 : f32
    %56 = vector.shape_cast %55 : vector<3x1xf32> to vector<3x1xf32>
    %57 = vector.broadcast %56 : vector<3x1xf32> to vector<3x128xf32>
    %58 = vector.broadcast %cst_13 : f32 to vector<3x128xf32>
    %59 = arith.select %54, %57, %58 : vector<3x128xi1>, vector<3x128xf32>
    %60 = arith.addf %52, %59 : vector<3x128xf32>
    %c7_i32 = arith.constant 7 : i32
    %61 = vector.broadcast %c7_i32 : i32 to vector<3x128xi32>
    %62 = arith.cmpi eq, %0, %61 : vector<3x128xi32>
    %63 = vector.extract_strided_slice %1 {offsets = [0, 7], sizes = [3, 1], strides = [1, 1]} : vector<8x16xf32> to vector<3x1xf32>
    %cst_14 = arith.constant 0.000000e+00 : f32
    %64 = vector.shape_cast %63 : vector<3x1xf32> to vector<3x1xf32>
    %65 = vector.broadcast %64 : vector<3x1xf32> to vector<3x128xf32>
    %66 = vector.broadcast %cst_14 : f32 to vector<3x128xf32>
    %67 = arith.select %62, %65, %66 : vector<3x128xi1>, vector<3x128xf32>
    %68 = arith.addf %60, %67 : vector<3x128xf32>
    %c8_i32 = arith.constant 8 : i32
    %69 = vector.broadcast %c8_i32 : i32 to vector<3x128xi32>
    %70 = arith.cmpi eq, %0, %69 : vector<3x128xi32>
    %71 = vector.extract_strided_slice %1 {offsets = [0, 8], sizes = [3, 1], strides = [1, 1]} : vector<8x16xf32> to vector<3x1xf32>
    %cst_15 = arith.constant 0.000000e+00 : f32
    %72 = vector.shape_cast %71 : vector<3x1xf32> to vector<3x1xf32>
    %73 = vector.broadcast %72 : vector<3x1xf32> to vector<3x128xf32>
    %74 = vector.broadcast %cst_15 : f32 to vector<3x128xf32>
    %75 = arith.select %70, %73, %74 : vector<3x128xi1>, vector<3x128xf32>
    %76 = arith.addf %68, %75 : vector<3x128xf32>
    %c9_i32 = arith.constant 9 : i32
    %77 = vector.broadcast %c9_i32 : i32 to vector<3x128xi32>
    %78 = arith.cmpi eq, %0, %77 : vector<3x128xi32>
    %79 = vector.extract_strided_slice %1 {offsets = [0, 9], sizes = [3, 1], strides = [1, 1]} : vector<8x16xf32> to vector<3x1xf32>
    %cst_16 = arith.constant 0.000000e+00 : f32
    %80 = vector.shape_cast %79 : vector<3x1xf32> to vector<3x1xf32>
    %81 = vector.broadcast %80 : vector<3x1xf32> to vector<3x128xf32>
    %82 = vector.broadcast %cst_16 : f32 to vector<3x128xf32>
    %83 = arith.select %78, %81, %82 : vector<3x128xi1>, vector<3x128xf32>
    %84 = arith.addf %76, %83 : vector<3x128xf32>
    %c10_i32 = arith.constant 10 : i32
    %85 = vector.broadcast %c10_i32 : i32 to vector<3x128xi32>
    %86 = arith.cmpi eq, %0, %85 : vector<3x128xi32>
    %87 = vector.extract_strided_slice %1 {offsets = [0, 10], sizes = [3, 1], strides = [1, 1]} : vector<8x16xf32> to vector<3x1xf32>
    %cst_17 = arith.constant 0.000000e+00 : f32
    %88 = vector.shape_cast %87 : vector<3x1xf32> to vector<3x1xf32>
    %89 = vector.broadcast %88 : vector<3x1xf32> to vector<3x128xf32>
    %90 = vector.broadcast %cst_17 : f32 to vector<3x128xf32>
    %91 = arith.select %86, %89, %90 : vector<3x128xi1>, vector<3x128xf32>
    %92 = arith.addf %84, %91 : vector<3x128xf32>
    %c11_i32 = arith.constant 11 : i32
    %93 = vector.broadcast %c11_i32 : i32 to vector<3x128xi32>
    %94 = arith.cmpi eq, %0, %93 : vector<3x128xi32>
    %95 = vector.extract_strided_slice %1 {offsets = [0, 11], sizes = [3, 1], strides = [1, 1]} : vector<8x16xf32> to vector<3x1xf32>
    %cst_18 = arith.constant 0.000000e+00 : f32
    %96 = vector.shape_cast %95 : vector<3x1xf32> to vector<3x1xf32>
    %97 = vector.broadcast %96 : vector<3x1xf32> to vector<3x128xf32>
    %98 = vector.broadcast %cst_18 : f32 to vector<3x128xf32>
    %99 = arith.select %94, %97, %98 : vector<3x128xi1>, vector<3x128xf32>
    %100 = arith.addf %92, %99 : vector<3x128xf32>
    %c12_i32 = arith.constant 12 : i32
    %101 = vector.broadcast %c12_i32 : i32 to vector<3x128xi32>
    %102 = arith.cmpi eq, %0, %101 : vector<3x128xi32>
    %103 = vector.extract_strided_slice %1 {offsets = [0, 12], sizes = [3, 1], strides = [1, 1]} : vector<8x16xf32> to vector<3x1xf32>
    %cst_19 = arith.constant 0.000000e+00 : f32
    %104 = vector.shape_cast %103 : vector<3x1xf32> to vector<3x1xf32>
    %105 = vector.broadcast %104 : vector<3x1xf32> to vector<3x128xf32>
    %106 = vector.broadcast %cst_19 : f32 to vector<3x128xf32>
    %107 = arith.select %102, %105, %106 : vector<3x128xi1>, vector<3x128xf32>
    %108 = arith.addf %100, %107 : vector<3x128xf32>
    %c13_i32 = arith.constant 13 : i32
    %109 = vector.broadcast %c13_i32 : i32 to vector<3x128xi32>
    %110 = arith.cmpi eq, %0, %109 : vector<3x128xi32>
    %111 = vector.extract_strided_slice %1 {offsets = [0, 13], sizes = [3, 1], strides = [1, 1]} : vector<8x16xf32> to vector<3x1xf32>
    %cst_20 = arith.constant 0.000000e+00 : f32
    %112 = vector.shape_cast %111 : vector<3x1xf32> to vector<3x1xf32>
    %113 = vector.broadcast %112 : vector<3x1xf32> to vector<3x128xf32>
    %114 = vector.broadcast %cst_20 : f32 to vector<3x128xf32>
    %115 = arith.select %110, %113, %114 : vector<3x128xi1>, vector<3x128xf32>
    %116 = arith.addf %108, %115 : vector<3x128xf32>
    %c14_i32 = arith.constant 14 : i32
    %117 = vector.broadcast %c14_i32 : i32 to vector<3x128xi32>
    %118 = arith.cmpi eq, %0, %117 : vector<3x128xi32>
    %119 = vector.extract_strided_slice %1 {offsets = [0, 14], sizes = [3, 1], strides = [1, 1]} : vector<8x16xf32> to vector<3x1xf32>
    %cst_21 = arith.constant 0.000000e+00 : f32
    %120 = vector.shape_cast %119 : vector<3x1xf32> to vector<3x1xf32>
    %121 = vector.broadcast %120 : vector<3x1xf32> to vector<3x128xf32>
    %122 = vector.broadcast %cst_21 : f32 to vector<3x128xf32>
    %123 = arith.select %118, %121, %122 : vector<3x128xi1>, vector<3x128xf32>
    %124 = arith.addf %116, %123 : vector<3x128xf32>
    %c15_i32 = arith.constant 15 : i32
    %125 = vector.broadcast %c15_i32 : i32 to vector<3x128xi32>
    %126 = arith.cmpi eq, %0, %125 : vector<3x128xi32>
    %127 = vector.extract_strided_slice %1 {offsets = [0, 15], sizes = [3, 1], strides = [1, 1]} : vector<8x16xf32> to vector<3x1xf32>
    %cst_22 = arith.constant 0.000000e+00 : f32
    %128 = vector.shape_cast %127 : vector<3x1xf32> to vector<3x1xf32>
    %129 = vector.broadcast %128 : vector<3x1xf32> to vector<3x128xf32>
    %130 = vector.broadcast %cst_22 : f32 to vector<3x128xf32>
    %131 = arith.select %126, %129, %130 : vector<3x128xi1>, vector<3x128xf32>
    %132 = arith.addf %124, %131 : vector<3x128xf32>
    %cst_23 = arith.constant dense<0.000000e+00> : vector<128xf32>
    %133 = vector.multi_reduction <add>, %132, %cst_23 [0] : vector<3x128xf32> to vector<128xf32>
    %134 = vector.shape_cast %133 : vector<128xf32> to vector<1x128xf32>
    %135 = vector.broadcast %3 : vector<8x1xf32> to vector<8x128xf32>
    %136 = arith.mulf %2, %135 : vector<8x128xf32>
    %cst_24 = arith.constant dense<0.000000e+00> : vector<128xf32>
    %137 = vector.multi_reduction <add>, %136, %cst_24 [0] : vector<8x128xf32> to vector<128xf32>
    %138 = vector.shape_cast %137 : vector<128xf32> to vector<1x128xf32>
    %139 = arith.addf %134, %138 : vector<1x128xf32>
    %140 = vector.shape_cast %139 : vector<1x128xf32> to vector<1x1x128xf32>
    %c0_25 = arith.constant 0 : index
    %c0_26 = arith.constant 0 : index
    %c0_27 = arith.constant 0 : index
    %141 = vector.load %arg5[%c0_25, %c0_26, %c0_27] : memref<1x1x128xf32, #tpu.memory_space<vmem>>, vector<1x1x128xf32>
    tpu.vector_store %arg5[%c0_25, %c0_26, %c0_27], %140 {strides = array<i32>} : memref<1x1x128xf32, #tpu.memory_space<vmem>>, vector<1x1x128xf32>,
    return
  }
  func.func @transform_0(%arg0: i32) -> (i32, i32) {
    %c0_i32 = arith.constant 0 : i32
    %c0_i32_0 = arith.constant 0 : i32
    return %c0_i32, %arg0 : i32, i32
  }
  func.func @transform_1(%arg0: i32) -> (i32, i32) {
    %c0_i32 = arith.constant 0 : i32
    %c0_i32_0 = arith.constant 0 : i32
    %c0_i32_1 = arith.constant 0 : i32
    return %c0_i32, %c0_i32_0 : i32, i32
  }
  func.func @transform_2(%arg0: i32) -> (i32, i32) {
    %c0_i32 = arith.constant 0 : i32
    %c0_i32_0 = arith.constant 0 : i32
    return %c0_i32, %arg0 : i32, i32
  }
  func.func @transform_3(%arg0: i32) -> (i32, i32) {
    %c0_i32 = arith.constant 0 : i32
    %c0_i32_0 = arith.constant 0 : i32
    %c0_i32_1 = arith.constant 0 : i32
    return %c0_i32, %c0_i32_0 : i32, i32
  }
  func.func @transform_4(%arg0: i32) -> (i32, i32, i32) {
    %c0_i32 = arith.constant 0 : i32
    %c0_i32_0 = arith.constant 0 : i32
    %c0_i32_1 = arith.constant 0 : i32
    return %arg0, %c0_i32, %c0_i32_0 : i32, i32, i32
  }
}

</mosaic_0001>

<llo_original>
// kernel: forward.1
$region0: #{forward.1}
  #allocation0 [shape = 'u32[]', space=smem, size = 0x4, offset = 0x4, fixed_abs, tag = 'smem constant byte address 0x4 - core index']
  #allocation1 [shape = 'u32[144,128]{1,0:T(1,128)}', space=vmem, size = 0x12000, scoped, tag = 'internal scratch']
  %s0 = inlined_call_operand.vmem [shape: s32[3,384], index: 0, kind: input, shape index: {}]
  %s1 = inlined_call_operand.vmem [shape: f32[8,16], index: 1, kind: input, shape index: {}]
  %s2 = inlined_call_operand.vmem [shape: f32[8,384], index: 2, kind: input, shape index: {}]
  %s3 = inlined_call_operand.vmem [shape: f32[8,1], index: 3, kind: input, shape index: {}]
  %s4 = inlined_call_operand.hbm [shape: f32[3,1,128], index: 4, kind: output, shape index: {}]
  %s5 = sld [smem:[#allocation0]]
  $region49: #{forward.1} parent=0
    _
  %s7 = ssub.s32 1, %s5
  %s8 = scalar_select 0, %s7, %s5
  $region1: #{forward.1} parent=0
    #allocation2 [shape = 'u8[1024]{0}', space=vmem, size = 0x400, scoped, tag = 'output window, operand 0']
    #allocation3 [shape = 's32[2]{0}', space=sflag, size = 0x8, scoped, tag = 'scoped memory for forward.1']
    %9 = vsyncpa [#allocation3], 0
    %s10 = scalar_lea.sflag [#allocation3], 1
    %11 = vsyncpa %s10, 0
    loop: start=0, step=1, limit=5
    $region2: #{forward.1} parent=1 // loop_pre_header
      _
    $region3: #{forward.1} parent=1 // loop_header
      %s13 = sphi 0, %s17
      %p14 = scmp.ge.s32.totalorder %s13, 5
      %s23 = sphi 0, %s25
      %s26 = sphi 0, %s23
      %s27 = sphi 0, %s26
      %s43 = sphi 0, %s27
      %s47 = sphi 0, %s47
      %s49 = sphi 0, %s47
      %s50 = sphi 0, %s49
      %s64 = sphi 0, %s50
      %s70 = sphi 0, %s72
      %s73 = sphi 0, %s70
      %s74 = sphi 0, %s73
      %s90 = sphi 0, %s74
      %s94 = sphi 0, %s94
      %s96 = sphi 0, %s94
      %s97 = sphi 0, %s96
      %s111 = sphi 0, %s97
      %s117 = sphi 0, %s119
      %s120 = sphi 0, %s117
      %s121 = sphi 0, %s120
      %s137 = sphi 0, %s121
    $region4: #{forward.1} parent=1 // loop_header_branch
      %16 = sbr.rel (%p14) target = $region8
    $region5: #{forward.1} parent=1 // loop_body
      %s18 = ssub.s32 %s13, 1
      %s19 = ssub.s32 %s13, 2
      %s20 = sadd.s32 %s13, 1
      %s21 = ssub.s32 %s13, %s20
      %p22 = scmp.eq.s32.totalorder %s21, 0
      %s24 = sadd.s32 %s23, 1
      %s25 = scalar_select %p22, %s23, %s24
      %p28 = pneg %p22
      %p29 = scmp.eq.s32.totalorder %s13, 2
      %p30 = por %p28, %p29
      %p31 = scmp.ne.s32.totalorder %s23, %s26
      %p32 = scmp.eq.s32.totalorder %s13, 0
      %p33 = por %p31, %p32
      %p34 = scmp.ne.s32.totalorder %s23, %s26
      %p35 = scmp.eq.s32.totalorder %s18, 2
      %p36 = por %p34, %p35
      %p37 = scmp.ne.s32.totalorder %s26, %s27
      %p38 = scmp.eq.s32.totalorder %s18, 0
      %p39 = por %p37, %p38
      %p40 = scmp.ne.s32.totalorder %s26, %s27
      %p41 = scmp.eq.s32.totalorder %s19, 2
      %p42 = por %p40, %p41
      %p44 = scmp.ne.s32.totalorder %s27, %s43
      %p45 = scmp.eq.s32.totalorder %s19, 0
      %p46 = por %p44, %p45
      %s48 = sadd.s32 %s47, 1
      %p51 = scmp.eq.s32.totalorder %s13, 2
      %p52 = scmp.ne.s32.totalorder %s47, %s49
      %p53 = scmp.eq.s32.totalorder %s13, 0
      %p54 = por %p52, %p53
      %p55 = scmp.ne.s32.totalorder %s47, %s49
      %p56 = scmp.eq.s32.totalorder %s18, 2
      %p57 = por %p55, %p56
      %p58 = scmp.ne.s32.totalorder %s49, %s50
      %p59 = scmp.eq.s32.totalorder %s18, 0
      %p60 = por %p58, %p59
      %p61 = scmp.ne.s32.totalorder %s49, %s50
      %p62 = scmp.eq.s32.totalorder %s19, 2
      %p63 = por %p61, %p62
      %p65 = scmp.ne.s32.totalorder %s50, %s64
      %p66 = scmp.eq.s32.totalorder %s19, 0
      %p67 = por %p65, %p66
      %s68 = ssub.s32 %s13, %s20
      %p69 = scmp.eq.s32.totalorder %s68, 0
      %s71 = sadd.s32 %s70, 1
      %s72 = scalar_select %p69, %s70, %s71
      %p75 = pneg %p69
      %p76 = scmp.eq.s32.totalorder %s13, 2
      %p77 = por %p75, %p76
      %p78 = scmp.ne.s32.totalorder %s70, %s73
      %p79 = scmp.eq.s32.totalorder %s13, 0
      %p80 = por %p78, %p79
      %p81 = scmp.ne.s32.totalorder %s70, %s73
      %p82 = scmp.eq.s32.totalorder %s18, 2
      %p83 = por %p81, %p82
      %p84 = scmp.ne.s32.totalorder %s73, %s74
      %p85 = scmp.eq.s32.totalorder %s18, 0
      %p86 = por %p84, %p85
      %p87 = scmp.ne.s32.totalorder %s73, %s74
      %p88 = scmp.eq.s32.totalorder %s19, 2
      %p89 = por %p87, %p88
      %p91 = scmp.ne.s32.totalorder %s74, %s90
      %p92 = scmp.eq.s32.totalorder %s19, 0
      %p93 = por %p91, %p92
      %s95 = sadd.s32 %s94, 1
      %p98 = scmp.eq.s32.totalorder %s13, 2
      %p99 = scmp.ne.s32.totalorder %s94, %s96
      %p100 = scmp.eq.s32.totalorder %s13, 0
      %p101 = por %p99, %p100
      %p102 = scmp.ne.s32.totalorder %s94, %s96
      %p103 = scmp.eq.s32.totalorder %s18, 2
      %p104 = por %p102, %p103
      %p105 = scmp.ne.s32.totalorder %s96, %s97
      %p106 = scmp.eq.s32.totalorder %s18, 0
      %p107 = por %p105, %p106
      %p108 = scmp.ne.s32.totalorder %s96, %s97
      %p109 = scmp.eq.s32.totalorder %s19, 2
      %p110 = por %p108, %p109
      %p112 = scmp.ne.s32.totalorder %s97, %s111
      %p113 = scmp.eq.s32.totalorder %s19, 0
      %p114 = por %p112, %p113
      %s115 = ssub.s32 %s13, %s20
      %p116 = scmp.eq.s32.totalorder %s115, 0
      %s118 = sadd.s32 %s117, 1
      %s119 = scalar_select %p116, %s117, %s118
      %p122 = pneg %p116
      %p123 = scmp.eq.s32.totalorder %s13, 2
      %p124 = por %p122, %p123
      %p125 = scmp.ne.s32.totalorder %s117, %s120
      %p126 = scmp.eq.s32.totalorder %s13, 0
      %p127 = por %p125, %p126
      %p128 = scmp.ne.s32.totalorder %s117, %s120
      %p129 = scmp.eq.s32.totalorder %s18, 2
      %p130 = por %p128, %p129
      %p131 = scmp.ne.s32.totalorder %s120, %s121
      %p132 = scmp.eq.s32.totalorder %s18, 0
      %p133 = por %p131, %p132
      %p134 = scmp.ne.s32.totalorder %s120, %s121
      %p135 = scmp.eq.s32.totalorder %s19, 2
      %p136 = por %p134, %p135
      %p138 = scmp.ne.s32.totalorder %s121, %s137
      %p139 = scmp.eq.s32.totalorder %s19, 0
      %p140 = por %p138, %p139
      %p141 = scmp.le.s32.totalorder 1, %s13
      %p142 = scmp.lt.s32.totalorder %s13, 4
      %p143 = pnand %p141, %p142
      %p144 = pneg %p143
      // Predicated region
      $region9: #{forward.1} parent=5 // pred_check
        _
      $region10: #{forward.1} parent=5 // pred_check_branch
        %146 = sbr.rel (%p143) target = $region12
      $region11: #{forward.1} parent=5 // pred_region
        %s147 = ssub.s32 %s13, 1
        // Predicated region
        $region13: #{forward.1} parent=11 // pred_check
          %p148 = pneg %p60
        $region14: #{forward.1} parent=11 // pred_check_branch
          %150 = sbr.rel (%p148) target = $region16
        $region15: #{forward.1} parent=11 // pred_region
          _
        $region16: #{forward.1} parent=11 // pred_fallthru
          _
        // Predicated region
        $region17: #{forward.1} parent=11 // pred_check
          %p151 = pneg %p107
        $region18: #{forward.1} parent=11 // pred_check_branch
          %153 = sbr.rel (%p151) target = $region20
        $region19: #{forward.1} parent=11 // pred_region
          _
        $region20: #{forward.1} parent=11 // pred_fallthru
          _
      $region12: #{forward.1} parent=5 // pred_fallthru
        _
      %p154 = scmp.lt.s32.totalorder %s13, 3
      // Predicated region
      $region21: #{forward.1} parent=5 // pred_check
        %p155 = pneg %p154
      $region22: #{forward.1} parent=5 // pred_check_branch
        %157 = sbr.rel (%p155) target = $region24
      $region23: #{forward.1} parent=5 // pred_region
        // Predicated region
        $region25: #{forward.1} parent=23 // pred_check
          %p158 = pneg %p33
        $region26: #{forward.1} parent=23 // pred_check_branch
          %160 = sbr.rel (%p158) target = $region28
        $region27: #{forward.1} parent=23 // pred_region
          %p161 = scmp.lt.s32.totalorder %s13, 2
          %s162 = scalar_select %p161, %s13, 2
          %s163 = smul.addr %s162, 4
          %s164 = scalar_lea.vmem %s0, %s163
        $region28: #{forward.1} parent=23 // pred_fallthru
          _
        // Predicated region
        $region29: #{forward.1} parent=23 // pred_check
          %p165 = pneg %p80
        $region30: #{forward.1} parent=23 // pred_check_branch
          %167 = sbr.rel (%p165) target = $region32
        $region31: #{forward.1} parent=23 // pred_region
          %p168 = scmp.lt.s32.totalorder %s13, 2
          %s169 = scalar_select %p168, %s13, 2
          %s170 = smul.addr %s169, 8
          %s171 = scalar_lea.vmem %s2, %s170
        $region32: #{forward.1} parent=23 // pred_fallthru
          _
      $region24: #{forward.1} parent=5 // pred_fallthru
        _
      %p172 = scmp.le.s32.totalorder 1, %s13
      %p173 = scmp.lt.s32.totalorder %s13, 4
      %p174 = pnand %p172, %p173
      %p175 = pneg %p174
      // Predicated region
      $region33: #{forward.1} parent=5 // pred_check
        _
      $region34: #{forward.1} parent=5 // pred_check_branch
        %177 = sbr.rel (%p174) target = $region36
      $region35: #{forward.1} parent=5 // pred_region
        %s178 = ssub.s32 %s13, 1
        %p179 = scmp.lt.s32.totalorder %s18, 2
        %s180 = scalar_select %p179, %s18, 2
        %s181 = smul.addr %s180, 4
        %s182 = scalar_lea.vmem %s0, %s181
        %p183 = pneg %p39
        %p184 = pneg %p36
        %p185 = pneg %p60
        %p186 = pneg %p57
        %p187 = scmp.lt.s32.totalorder %s18, 2
        %s188 = scalar_select %p187, %s18, 2
        %s189 = smul.addr %s188, 8
        %s190 = scalar_lea.vmem %s2, %s189
        %p191 = pneg %p86
        %p192 = pneg %p83
        %p193 = pneg %p107
        %p194 = pneg %p104
        %p195 = pneg %p133
        %p196 = pneg %p130
        %s197 = sand.u32 %s120, 1
        %s198 = scalar_lea.sflag [#allocation3], %s197
        %s199 = sand.u32 %s120, 1
        %s200 = scalar_lea.vmem [#allocation2], %s199
        %p201 = scmp.lt.s32.totalorder %s18, 2
        %s202 = scalar_select %p201, %s18, 2
        %s203 = smul.addr %s202, 4
        %s204 = scalar_lea.vmem %s0, %s203
        %p205 = scmp.lt.s32.totalorder %s18, 2
        %s206 = scalar_select %p205, %s18, 2
        %s207 = smul.addr %s206, 8
        %s208 = scalar_lea.vmem %s2, %s207
        %v209 = vld [vmem:[%s204] sm:$0x7]
        %v210 = vld [vmem:[%s1] sm:$0xff]
        %v211 = vld [vmem:[%s208] sm:$0xff]
        %v212 = vld [vmem:[%s3] sm:$0xff]
        %vm213 = vcmp.eq.s32.totalorder %v209, 0
        %215 = vset.pattern.permute.xlu0 0
        %216 = vperm.xlu0 %215, %v210
        %v217 = vpop.permute.xlu0 %216
        %v219 = vsel %vm213, %v217, 0.0
        %v220 = vadd.f32 %v219, 0.0
        %vm221 = vcmp.eq.s32.totalorder %v209, 1
        %222 = vset.pattern.permute.xlu0 1
        %223 = vperm.xlu0 %222, %v210
        %v224 = vpop.permute.xlu0 %223
        %v226 = vsel %vm221, %v224, 0.0
        %v227 = vadd.f32 %v220, %v226
        %vm228 = vcmp.eq.s32.totalorder %v209, 2
        %229 = vset.pattern.permute.xlu0 2
        %230 = vperm.xlu0 %229, %v210
        %v231 = vpop.permute.xlu0 %230
        %v233 = vsel %vm228, %v231, 0.0
        %v234 = vadd.f32 %v227, %v233
        %vm235 = vcmp.eq.s32.totalorder %v209, 3
        %236 = vset.pattern.permute.xlu0 3
        %237 = vperm.xlu0 %236, %v210
        %v238 = vpop.permute.xlu0 %237
        %v240 = vsel %vm235, %v238, 0.0
        %v241 = vadd.f32 %v234, %v240
        %vm242 = vcmp.eq.s32.totalorder %v209, 4
        %243 = vset.pattern.permute.xlu0 4
        %244 = vperm.xlu0 %243, %v210
        %v245 = vpop.permute.xlu0 %244
        %v247 = vsel %vm242, %v245, 0.0
        %v248 = vadd.f32 %v241, %v247
        %vm249 = vcmp.eq.s32.totalorder %v209, 5
        %250 = vset.pattern.permute.xlu0 5
        %251 = vperm.xlu0 %250, %v210
        %v252 = vpop.permute.xlu0 %251
        %v254 = vsel %vm249, %v252, 0.0
        %v255 = vadd.f32 %v248, %v254
        %vm256 = vcmp.eq.s32.totalorder %v209, 6
        %257 = vset.pattern.permute.xlu0 6
        %258 = vperm.xlu0 %257, %v210
        %v259 = vpop.permute.xlu0 %258
        %v261 = vsel %vm256, %v259, 0.0
        %v262 = vadd.f32 %v255, %v261
        %vm263 = vcmp.eq.s32.totalorder %v209, 7
        %264 = vset.pattern.permute.xlu0 7
        %265 = vperm.xlu0 %264, %v210
        %v266 = vpop.permute.xlu0 %265
        %v268 = vsel %vm263, %v266, 0.0
        %v269 = vadd.f32 %v262, %v268
        %vm270 = vcmp.eq.s32.totalorder %v209, 8
        %271 = vset.pattern.permute.xlu0 8
        %272 = vperm.xlu0 %271, %v210
        %v273 = vpop.permute.xlu0 %272
        %v275 = vsel %vm270, %v273, 0.0
        %v276 = vadd.f32 %v269, %v275
        %vm277 = vcmp.eq.s32.totalorder %v209, 9
        %278 = vset.pattern.permute.xlu0 9
        %279 = vperm.xlu0 %278, %v210
        %v280 = vpop.permute.xlu0 %279
        %v282 = vsel %vm277, %v280, 0.0
        %v283 = vadd.f32 %v276, %v282
        %vm284 = vcmp.eq.s32.totalorder %v209, 10
        %285 = vset.pattern.permute.xlu0 10
        %286 = vperm.xlu0 %285, %v210
        %v287 = vpop.permute.xlu0 %286
        %v289 = vsel %vm284, %v287, 0.0
        %v290 = vadd.f32 %v283, %v289
        %vm291 = vcmp.eq.s32.totalorder %v209, 11
        %292 = vset.pattern.permute.xlu0 11
        %293 = vperm.xlu0 %292, %v210
        %v294 = vpop.permute.xlu0 %293
        %v296 = vsel %vm291, %v294, 0.0
        %v297 = vadd.f32 %v290, %v296
        %vm298 = vcmp.eq.s32.totalorder %v209, 12
        %299 = vset.pattern.permute.xlu0 12
        %300 = vperm.xlu0 %299, %v210
        %v301 = vpop.permute.xlu0 %300
        %v303 = vsel %vm298, %v301, 0.0
        %v304 = vadd.f32 %v297, %v303
        %vm305 = vcmp.eq.s32.totalorder %v209, 13
        %306 = vset.pattern.permute.xlu0 13
        %307 = vperm.xlu0 %306, %v210
        %v308 = vpop.permute.xlu0 %307
        %v310 = vsel %vm305, %v308, 0.0
        %v311 = vadd.f32 %v304, %v310
        %vm312 = vcmp.eq.s32.totalorder %v209, 14
        %313 = vset.pattern.permute.xlu0 14
        %314 = vperm.xlu0 %313, %v210
        %v315 = vpop.permute.xlu0 %314
        %v317 = vsel %vm312, %v315, 0.0
        %v318 = vadd.f32 %v311, %v317
        %vm319 = vcmp.eq.s32.totalorder %v209, 15
        %320 = vset.pattern.permute.xlu0 15
        %321 = vperm.xlu0 %320, %v210
        %v322 = vpop.permute.xlu0 %321
        %v324 = vsel %vm319, %v322, 0.0
        %v325 = vadd.f32 %v318, %v324
        %vm326 = vcmask 1042432
        %v327 = vsel %vm326, %v325, 0.0
        %v328 = vrot.slane %v327, 4
        %v329 = vadd.f32 %v327, %v328
        %v330 = vrot.slane %v329, 2
        %v331 = vadd.f32 %v329, %v330
        %v332 = vrot.slane %v331, 1
        %v333 = vadd.f32 %v331, %v332
        %335 = vset.pattern.permute.xlu0 0
        %336 = vperm.xlu0 %335, %v212
        %v337 = vpop.permute.xlu0 %336
        %v339 = vmul.f32 %v211, %v337
        %v340 = vrot.slane %v339, 4
        %v341 = vadd.f32 %v339, %v340
        %v342 = vrot.slane %v341, 2
        %v343 = vadd.f32 %v341, %v342
        %v344 = vrot.slane %v343, 1
        %v345 = vadd.f32 %v343, %v344
        %v346 = vadd.f32 %v333, %v345
        %347 = vst [vmem:[%s200] sm:$0x1] %v346
        %s348 = sand.u32 %s120, 1
        %s349 = scalar_lea.sflag [#allocation3], %s348
        %s350 = sand.u32 %s120, 1
        %s351 = scalar_lea.vmem [#allocation2], %s350
        // Predicated region
        $region37: #{forward.1} parent=35 // pred_check
          %p352 = pneg %p130
        $region38: #{forward.1} parent=35 // pred_check_branch
          %354 = sbr.rel (%p352) target = $region40
        $region39: #{forward.1} parent=35 // pred_region
          %s356 = ssub.s32 16, 16
          %357 = vsyncadd %s349, %s356
          %s358 = smul.addr %s18, 16
          %s359 = scalar_lea.hbm %s4, %s358
          %s361 = sshll.u32 %s351, 4
          %s362 = int_to_ptr.vmem [resolvable:$true] %s361
          %364 = dma.vmem_to_hbm [thread:$0]  %s362, 16, %s359, %s349
        $region40: #{forward.1} parent=35 // pred_fallthru
          _
      $region36: #{forward.1} parent=5 // pred_fallthru
        _
      %p365 = scmp.le.s32.totalorder 2, %s13
      // Predicated region
      $region41: #{forward.1} parent=5 // pred_check
        %p366 = pneg %p365
      $region42: #{forward.1} parent=5 // pred_check_branch
        %368 = sbr.rel (%p366) target = $region44
      $region43: #{forward.1} parent=5 // pred_region
        %s369 = ssub.s32 %s13, 2
        // Predicated region
        $region45: #{forward.1} parent=43 // pred_check
          %p370 = pneg %p136
        $region46: #{forward.1} parent=43 // pred_check_branch
          %372 = sbr.rel (%p370) target = $region48
        $region47: #{forward.1} parent=43 // pred_region
          %s373 = sand.u32 %s121, 1
          %s374 = scalar_lea.sflag [#allocation3], %s373
          %s375 = sand.u32 %s121, 1
          %s376 = scalar_lea.vmem [#allocation2], %s375
          %377 = dma.done %s374, 16
        $region48: #{forward.1} parent=43 // pred_fallthru
          _
      $region44: #{forward.1} parent=5 // pred_fallthru
        _
    $region6: #{forward.1} parent=1 // loop_footer
      %s17 = sadd.s32 1, %s13
    $region7: #{forward.1} parent=1 // loop_footer_branch
      %12 = sbr.rel target = $region3
    $region8: #{forward.1} parent=1 // loop_exit
      _
    %378 = vsyncpa [#allocation3], 1
    %s379 = scalar_lea.sflag [#allocation3], 1
    %380 = vsyncpa %s379, 1

</llo_original>
